<compile_context>
chip_gen: v7x
topology: tpu7x:2x2x1
jax: 0.10.0
libtpu: 0.0.40
codegen_flags: <defaults>
</compile_context>

<pallas_src>
import functools

import jax
import jax.numpy as jnp
from jax.experimental import pallas as pl
from jax.experimental.pallas import tpu as pltpu

IN_FEATURES = 36
HIDDEN = 250
HIDDEN_PADDED = 256          # MXU/lane-aligned hidden width (zero-padded)
OUT_FEATURES = 8 * 2         # 16
LANE = 128
MAX_TILE_LANES = 2048        # batch-tile upper bound (compute >> 0.35us overhead)


def _dqn_kernel(xt_ref, w1_ref, b1_ref, w2_ref, b2_ref, out_ref, *,
                bf16_epilogue):
    # xt_ref : [36, tb]   bf16   (batch on lanes)
    # w1_ref : [256, 36]  bf16   (PyTorch layout [out, in], hidden padded)
    # b1_ref : [256, 1]   f32
    # w2_ref : [16, 256]  bf16
    # b2_ref : [16, 1]    f32
    # out_ref: [16, tb]   f32    (lane-dense output tile)
    h = jnp.dot(w1_ref[...], xt_ref[...],
                preferred_element_type=jnp.float32)              # [256, tb] f32
    if bf16_epilogue:
        # v6e/v7x: bf16 VPU -> bias + ReLU in bf16; halves VALU element-ops
        # and the h intermediate's VMEM traffic, and removes the separate
        # f32->bf16 cast before the second matmul.
        h = jnp.maximum(h.astype(jnp.bfloat16)
                        + b1_ref[...].astype(jnp.bfloat16), 0.0)
    else:
        # v5e / v4: no bf16 VPU -> keep the epilogue in f32, cast after ReLU.
        h = jnp.maximum(h + b1_ref[...], 0.0).astype(jnp.bfloat16)
    out = jnp.dot(w2_ref[...], h,
                  preferred_element_type=jnp.float32) + b2_ref[...]  # [16, tb]
    out_ref[...] = out.astype(out_ref.dtype)


def _round_up(n, m):
    return ((n + m - 1) // m) * m


def _device_kind():
    try:
        return jax.devices()[0].device_kind.lower()
    except Exception:
        return ""


def _vmem_limit_bytes(tb):
    x_tile = 48 * tb * 2                             # bf16 [36->48, tb]
    out_tile = OUT_FEATURES * tb * 4                 # f32  [16, tb]
    h_tmp = HIDDEN_PADDED * tb * (4 + 2)             # f32 h + bf16 copy
    weights = ((HIDDEN_PADDED * 48 + OUT_FEATURES * HIDDEN_PADDED) * 2
               + (HIDDEN_PADDED + OUT_FEATURES) * LANE * 4)
    total = 2 * (x_tile + out_tile) + h_tmp + weights  # in/out double-buffered
    # 2x headroom for Mosaic temporaries, floor 16 MiB, cap well under 64 MiB.
    return int(min(max(2 * total + (4 << 20), 16 << 20), 56 << 20))


def prepare_params(w1, b1, w2, b2):
    """Pad hidden 250->256 and cast weights to bf16 (PyTorch [out, in] layout).

    w1: [250, 36], b1: [250], w2: [16, 250], b2: [16].
    Padded hidden rows/cols are zero, so the math is unchanged.
    """
    w1p = jnp.zeros((HIDDEN_PADDED, IN_FEATURES), jnp.float32).at[:HIDDEN, :].set(w1)
    b1p = jnp.zeros((HIDDEN_PADDED, 1), jnp.float32).at[:HIDDEN, 0].set(b1)
    w2p = jnp.zeros((OUT_FEATURES, HIDDEN_PADDED), jnp.float32).at[:, :HIDDEN].set(w2)
    b2p = b2.reshape(OUT_FEATURES, 1).astype(jnp.float32)
    return (w1p.astype(jnp.bfloat16), b1p, w2p.astype(jnp.bfloat16), b2p)


def dqn_yellow_forward(x, params, tile_lanes=None):
    """x: [B, 36] float32 -> [B, 16] float32."""
    w1p, b1p, w2p, b2p = params
    B = x.shape[0]
    kind = _device_kind()
    bf16_epilogue = ("v6" in kind) or ("v7" in kind)
    two_tensorcores = "v7" in kind

    max_tile = _round_up(tile_lanes if tile_lanes is not None else MAX_TILE_LANES,
                         LANE)
    b_lane = _round_up(B, LANE)
    n_steps = pl.cdiv(b_lane, max_tile)
    if two_tensorcores and n_steps == 1 and b_lane >= 2 * LANE:
        n_steps = 2                      # give the 2nd TensorCore work on v7x
    tb = _round_up(pl.cdiv(b_lane, n_steps), LANE)
    Bp = tb * n_steps

    # Feature-major input: [36, Bp] bf16, batch on lanes.
    xt = x.astype(jnp.bfloat16).T
    if Bp != B:
        xt = jnp.pad(xt, ((0, 0), (0, Bp - B)))

    def resident(shape):                 # block index never changes -> one DMA
        return pl.BlockSpec(shape, lambda i: (0, 0))

    kernel = functools.partial(_dqn_kernel, bf16_epilogue=bf16_epilogue)

    out_t = pl.pallas_call(
        kernel,
        out_shape=jax.ShapeDtypeStruct((OUT_FEATURES, Bp), jnp.float32),
        grid=(Bp // tb,),
        in_specs=[
            pl.BlockSpec((IN_FEATURES, tb), lambda i: (0, i)),     # x^T tile
            resident((HIDDEN_PADDED, IN_FEATURES)),                # w1
            resident((HIDDEN_PADDED, 1)),                          # b1
            resident((OUT_FEATURES, HIDDEN_PADDED)),               # w2
            resident((OUT_FEATURES, 1)),                           # b2
        ],
        out_specs=pl.BlockSpec((OUT_FEATURES, tb), lambda i: (0, i)),
        compiler_params=pltpu.CompilerParams(
            dimension_semantics=("parallel",),
            vmem_limit_bytes=_vmem_limit_bytes(tb)),
    )(xt, w1p, b1p, w2p, b2p)

    # Padded batch columns hold relu(b1)@w2+b2; they are sliced off here.
    return out_t[:, :B].T


def init_params(key):
    """Deterministic init matching nn.Linear's U(-1/sqrt(fan_in), +), [out,in]."""
    k1, k2, k3, k4 = jax.random.split(key, 4)
    bound1 = 1.0 / jnp.sqrt(jnp.float32(IN_FEATURES))
    bound2 = 1.0 / jnp.sqrt(jnp.float32(HIDDEN))
    w1 = jax.random.uniform(k1, (HIDDEN, IN_FEATURES), jnp.float32,
                            minval=-bound1, maxval=bound1)
    b1 = jax.random.uniform(k2, (HIDDEN,), jnp.float32,
                            minval=-bound1, maxval=bound1)
    w2 = jax.random.uniform(k3, (OUT_FEATURES, HIDDEN), jnp.float32,
                            minval=-bound2, maxval=bound2)
    b2 = jax.random.uniform(k4, (OUT_FEATURES,), jnp.float32,
                            minval=-bound2, maxval=bound2)
    return w1, b1, w2, b2


if __name__ == "__main__":
    key = jax.random.PRNGKey(0)
    kx, kp = jax.random.split(key)

    B = 2
    x = jax.random.normal(kx, (B, IN_FEATURES), dtype=jnp.float32)
    w1, b1, w2, b2 = init_params(kp)
    params = prepare_params(w1, b1, w2, b2)

    out = dqn_yellow_forward(x, params)
    out = jax.block_until_ready(out)

    # Pure-JAX f32 reference (unpadded, PyTorch semantics: x @ W.T + b).
    # Tolerance loosened because the kernel uses bf16 inputs/weights.
    ref = jnp.maximum(x @ w1.T + b1[None, :], 0.0) @ w2.T + b2[None, :]
    assert out.shape == (B, OUT_FEATURES)
    assert jnp.allclose(out, ref, atol=5e-2, rtol=5e-2), \
        f"max abs err {jnp.max(jnp.abs(out - ref))}"

    print("KERNEL_OK")
</pallas_src>

<mosaic_0001>
module attributes {stable_mosaic.version = 11 : i64} {
  func.func @_dqn_kernel(%arg0: i32, %arg1: memref<36x128xbf16, #tpu.memory_space<vmem>>, %arg2: memref<256x36xbf16, #tpu.memory_space<vmem>>, %arg3: memref<256x1xf32, #tpu.memory_space<vmem>>, %arg4: memref<16x256xbf16, #tpu.memory_space<vmem>>, %arg5: memref<16x1xf32, #tpu.memory_space<vmem>>, %arg6: memref<16x128xf32, #tpu.memory_space<vmem>>) attributes {dimension_semantics = [#tpu.dimension_semantics<parallel>], iteration_bounds = array<i64: 1>, scalar_prefetch = 0 : i64, scratch_operands = 0 : i64, tpu.core_type = #tpu.core_type<tc>, window_params = [{transform_indices = @transform_0, window_bounds = array<i64: 36, 128>}, {pipeline_mode = #tpu.pipeline_mode<synchronous>, transform_indices = @transform_1, window_bounds = array<i64: 256, 36>}, {pipeline_mode = #tpu.pipeline_mode<synchronous>, transform_indices = @transform_2, window_bounds = array<i64: 256, 1>}, {pipeline_mode = #tpu.pipeline_mode<synchronous>, transform_indices = @transform_3, window_bounds = array<i64: 16, 256>}, {pipeline_mode = #tpu.pipeline_mode<synchronous>, transform_indices = @transform_4, window_bounds = array<i64: 16, 1>}, {transform_indices = @transform_5, window_bounds = array<i64: 16, 128>}]} {
    %c0 = arith.constant 0 : index
    %c0_0 = arith.constant 0 : index
    %0 = vector.load %arg2[%c0, %c0_0] : memref<256x36xbf16, #tpu.memory_space<vmem>>, vector<256x36xbf16>
    %c0_1 = arith.constant 0 : index
    %c0_2 = arith.constant 0 : index
    %1 = vector.load %arg1[%c0_1, %c0_2] : memref<36x128xbf16, #tpu.memory_space<vmem>>, vector<36x128xbf16>
    %cst = arith.constant dense<0.000000e+00> : vector<256x128xf32>
    %2 = tpu.matmul %0, %1, %cst {dimension_numbers = #tpu.dot_dimension_numbers<[1], [0], [0], [1], [0, 0, 1, 1], [], []>} : vector<256x36xbf16>, vector<36x128xbf16>, vector<256x128xf32> -> vector<256x128xf32>
    %c0_3 = arith.constant 0 : index
    %c0_4 = arith.constant 0 : index
    %3 = vector.load %arg3[%c0_3, %c0_4] : memref<256x1xf32, #tpu.memory_space<vmem>>, vector<256x1xf32>
    %4 = vector.broadcast %3 : vector<256x1xf32> to vector<256x128xf32>
    %5 = arith.addf %2, %4 : vector<256x128xf32>
    %cst_5 = arith.constant 0.000000e+00 : f32
    %6 = vector.broadcast %cst_5 : f32 to vector<256x128xf32>
    %7 = arith.maximumf %5, %6 : vector<256x128xf32>
    %8 = arith.truncf %7 : vector<256x128xf32> to vector<256x128xbf16>
    %c0_6 = arith.constant 0 : index
    %c0_7 = arith.constant 0 : index
    %9 = vector.load %arg4[%c0_6, %c0_7] : memref<16x256xbf16, #tpu.memory_space<vmem>>, vector<16x256xbf16>
    %cst_8 = arith.constant dense<0.000000e+00> : vector<16x128xf32>
    %10 = tpu.matmul %9, %8, %cst_8 {dimension_numbers = #tpu.dot_dimension_numbers<[1], [0], [0], [1], [0, 0, 1, 1], [], []>} : vector<16x256xbf16>, vector<256x128xbf16>, vector<16x128xf32> -> vector<16x128xf32>
    %c0_9 = arith.constant 0 : index
    %c0_10 = arith.constant 0 : index
    %11 = vector.load %arg5[%c0_9, %c0_10] : memref<16x1xf32, #tpu.memory_space<vmem>>, vector<16x1xf32>
    %12 = vector.broadcast %11 : vector<16x1xf32> to vector<16x128xf32>
    %13 = arith.addf %10, %12 : vector<16x128xf32>
    %c0_11 = arith.constant 0 : index
    %c0_12 = arith.constant 0 : index
    %14 = vector.load %arg6[%c0_11, %c0_12] : memref<16x128xf32, #tpu.memory_space<vmem>>, vector<16x128xf32>
    tpu.vector_store %arg6[%c0_11, %c0_12], %13 {strides = array<i32>} : memref<16x128xf32, #tpu.memory_space<vmem>>, vector<16x128xf32>,
    return
  }
  func.func @transform_0(%arg0: i32) -> (i32, i32) {
    %c0_i32 = arith.constant 0 : i32
    %c0_i32_0 = arith.constant 0 : i32
    return %c0_i32, %arg0 : i32, i32
  }
  func.func @transform_1(%arg0: i32) -> (i32, i32) {
    %c0_i32 = arith.constant 0 : i32
    %c0_i32_0 = arith.constant 0 : i32
    %c0_i32_1 = arith.constant 0 : i32
    return %c0_i32, %c0_i32_0 : i32, i32
  }
  func.func @transform_2(%arg0: i32) -> (i32, i32) {
    %c0_i32 = arith.constant 0 : i32
    %c0_i32_0 = arith.constant 0 : i32
    %c0_i32_1 = arith.constant 0 : i32
    return %c0_i32, %c0_i32_0 : i32, i32
  }
  func.func @transform_3(%arg0: i32) -> (i32, i32) {
    %c0_i32 = arith.constant 0 : i32
    %c0_i32_0 = arith.constant 0 : i32
    %c0_i32_1 = arith.constant 0 : i32
    return %c0_i32, %c0_i32_0 : i32, i32
  }
  func.func @transform_4(%arg0: i32) -> (i32, i32) {
    %c0_i32 = arith.constant 0 : i32
    %c0_i32_0 = arith.constant 0 : i32
    %c0_i32_1 = arith.constant 0 : i32
    return %c0_i32, %c0_i32_0 : i32, i32
  }
  func.func @transform_5(%arg0: i32) -> (i32, i32) {
    %c0_i32 = arith.constant 0 : i32
    %c0_i32_0 = arith.constant 0 : i32
    return %c0_i32, %arg0 : i32, i32
  }
}

</mosaic_0001>

<llo_original>
// kernel: tpu_custom_call.1
$region0: #{tpu_custom_call.1}
  #allocation0 [shape = 'u32[]', space=smem, size = 0x4, offset = 0x4, fixed_abs, tag = 'smem constant byte address 0x4 - core index']
  #allocation1 [shape = 'u32[144,128]{1,0:T(1,128)}', space=vmem, size = 0x12000, scoped, tag = 'internal scratch']
  %s0 = inlined_call_operand.vmem [shape: bf16[36,128], index: 0, kind: input, shape index: {}]
  %s1 = inlined_call_operand.vmem [shape: bf16[256,36], index: 1, kind: input, shape index: {}]
  %s2 = inlined_call_operand.vmem [shape: f32[256,1], index: 2, kind: input, shape index: {}]
  %s3 = inlined_call_operand.vmem [shape: bf16[16,256], index: 3, kind: input, shape index: {}]
  %s4 = inlined_call_operand.vmem [shape: f32[16,1], index: 4, kind: input, shape index: {}]
  %s5 = inlined_call_operand.hbm [shape: f32[16,128], index: 5, kind: output, shape index: {}]
  %s6 = sld [smem:[#allocation0]]
  $region30: #{tpu_custom_call.1} parent=0
    _
  %s8 = ssub.s32 1, %s6
  %s9 = scalar_select 0, %s8, %s6
  $region1: #{tpu_custom_call.1} parent=0
    #allocation2 [shape = 'u8[8192]{0}', space=vmem, size = 0x2000, scoped, tag = 'output window, operand 0, single buffered']
    #allocation3 [shape = 's32[1]{0}', space=sflag, size = 0x4, scoped, tag = 'scoped memory for tpu_custom_call.1']
    %10 = vsyncpa [#allocation3], 0
    // Predicated region
    $region2: #{tpu_custom_call.1} parent=1 // pred_check
      _
    $region3: #{tpu_custom_call.1} parent=1 // pred_check_branch
      %12 = sbr.rel (0) target = $region5
    $region4: #{tpu_custom_call.1} parent=1 // pred_region
      _
    $region5: #{tpu_custom_call.1} parent=1 // pred_fallthru
      _
    // Predicated region
    $region6: #{tpu_custom_call.1} parent=1 // pred_check
      _
    $region7: #{tpu_custom_call.1} parent=1 // pred_check_branch
      %14 = sbr.rel (0) target = $region9
    $region8: #{tpu_custom_call.1} parent=1 // pred_region
      _
    $region9: #{tpu_custom_call.1} parent=1 // pred_fallthru
      _
    // Predicated region
    $region10: #{tpu_custom_call.1} parent=1 // pred_check
      _
    $region11: #{tpu_custom_call.1} parent=1 // pred_check_branch
      %16 = sbr.rel (0) target = $region13
    $region12: #{tpu_custom_call.1} parent=1 // pred_region
      _
    $region13: #{tpu_custom_call.1} parent=1 // pred_fallthru
      _
    // Predicated region
    $region14: #{tpu_custom_call.1} parent=1 // pred_check
      _
    $region15: #{tpu_custom_call.1} parent=1 // pred_check_branch
      %18 = sbr.rel (0) target = $region17
    $region16: #{tpu_custom_call.1} parent=1 // pred_region
      _
    $region17: #{tpu_custom_call.1} parent=1 // pred_fallthru
      _
    // Predicated region
    $region18: #{tpu_custom_call.1} parent=1 // pred_check
      _
    $region19: #{tpu_custom_call.1} parent=1 // pred_check_branch
      %20 = sbr.rel (0) target = $region21
    $region20: #{tpu_custom_call.1} parent=1 // pred_region
      _
    $region21: #{tpu_custom_call.1} parent=1 // pred_fallthru
      _
    %v22 = vld [vmem:[%s1] sm:$0xf]
    %v23 = vld [vmem:[%s1 + $0x4] sm:$0xf]
    %v24 = vld [vmem:[%s1 + $0x8] sm:$0xf]
    %v25 = vld [vmem:[%s1 + $0xc] sm:$0xf]
    %v26 = vld [vmem:[%s1 + $0x10] sm:$0xf]
    %v27 = vld [vmem:[%s1 + $0x14] sm:$0xf]
    %v28 = vld [vmem:[%s1 + $0x18] sm:$0xf]
    %v29 = vld [vmem:[%s1 + $0x1c] sm:$0xf]
    %v30 = vld [vmem:[%s1 + $0x20] sm:$0xf]
    %v31 = vld [vmem:[%s1 + $0x24] sm:$0xf]
    %v32 = vld [vmem:[%s1 + $0x28] sm:$0xf]
    %v33 = vld [vmem:[%s1 + $0x2c] sm:$0xf]
    %v34 = vld [vmem:[%s1 + $0x30] sm:$0xf]
    %v35 = vld [vmem:[%s1 + $0x34] sm:$0xf]
    %v36 = vld [vmem:[%s1 + $0x38] sm:$0xf]
    %v37 = vld [vmem:[%s1 + $0x3c] sm:$0xf]
    %v38 = vld [vmem:[%s1 + $0x40] sm:$0xf]
    %v39 = vld [vmem:[%s1 + $0x44] sm:$0xf]
    %v40 = vld [vmem:[%s1 + $0x48] sm:$0xf]
    %v41 = vld [vmem:[%s1 + $0x4c] sm:$0xf]
    %v42 = vld [vmem:[%s1 + $0x50] sm:$0xf]
    %v43 = vld [vmem:[%s1 + $0x54] sm:$0xf]
    %v44 = vld [vmem:[%s1 + $0x58] sm:$0xf]
    %v45 = vld [vmem:[%s1 + $0x5c] sm:$0xf]
    %v46 = vld [vmem:[%s1 + $0x60] sm:$0xf]
    %v47 = vld [vmem:[%s1 + $0x64] sm:$0xf]
    %v48 = vld [vmem:[%s1 + $0x68] sm:$0xf]
    %v49 = vld [vmem:[%s1 + $0x6c] sm:$0xf]
    %v50 = vld [vmem:[%s1 + $0x70] sm:$0xf]
    %v51 = vld [vmem:[%s1 + $0x74] sm:$0xf]
    %v52 = vld [vmem:[%s1 + $0x78] sm:$0xf]
    %v53 = vld [vmem:[%s1 + $0x7c] sm:$0xf]
    %v54 = vld [vmem:[%s0] sm:$0xf]
    %v55 = vld [vmem:[%s0 + $0x4] sm:$0xf]
    %v56 = vld [vmem:[%s0 + $0x8] sm:$0xf]
    %v57 = vld [vmem:[%s0 + $0xc] sm:$0xf]
    %v58 = vld [vmem:[%s0 + $0x10] sm:$0x3]
    %v59 = vld [vmem:[%s2] sm:$0xff]
    %v60 = vld [vmem:[%s2 + $0x8] sm:$0xff]
    %v61 = vld [vmem:[%s2 + $0x10] sm:$0xff]
    %v62 = vld [vmem:[%s2 + $0x18] sm:$0xff]
    %v63 = vld [vmem:[%s2 + $0x20] sm:$0xff]
    %v64 = vld [vmem:[%s2 + $0x28] sm:$0xff]
    %v65 = vld [vmem:[%s2 + $0x30] sm:$0xff]
    %v66 = vld [vmem:[%s2 + $0x38] sm:$0xff]
    %v67 = vld [vmem:[%s2 + $0x40] sm:$0xff]
    %v68 = vld [vmem:[%s2 + $0x48] sm:$0xff]
    %v69 = vld [vmem:[%s2 + $0x50] sm:$0xff]
    %v70 = vld [vmem:[%s2 + $0x58] sm:$0xff]
    %v71 = vld [vmem:[%s2 + $0x60] sm:$0xff]
    %v72 = vld [vmem:[%s2 + $0x68] sm:$0xff]
    %v73 = vld [vmem:[%s2 + $0x70] sm:$0xff]
    %v74 = vld [vmem:[%s2 + $0x78] sm:$0xff]
    %v75 = vld [vmem:[%s2 + $0x80] sm:$0xff]
    %v76 = vld [vmem:[%s2 + $0x88] sm:$0xff]
    %v77 = vld [vmem:[%s2 + $0x90] sm:$0xff]
    %v78 = vld [vmem:[%s2 + $0x98] sm:$0xff]
    %v79 = vld [vmem:[%s2 + $0xa0] sm:$0xff]
    %v80 = vld [vmem:[%s2 + $0xa8] sm:$0xff]
    %v81 = vld [vmem:[%s2 + $0xb0] sm:$0xff]
    %v82 = vld [vmem:[%s2 + $0xb8] sm:$0xff]
    %v83 = vld [vmem:[%s2 + $0xc0] sm:$0xff]
    %v84 = vld [vmem:[%s2 + $0xc8] sm:$0xff]
    %v85 = vld [vmem:[%s2 + $0xd0] sm:$0xff]
    %v86 = vld [vmem:[%s2 + $0xd8] sm:$0xff]
    %v87 = vld [vmem:[%s2 + $0xe0] sm:$0xff]
    %v88 = vld [vmem:[%s2 + $0xe8] sm:$0xff]
    %v89 = vld [vmem:[%s2 + $0xf0] sm:$0xff]
    %v90 = vld [vmem:[%s2 + $0xf8] sm:$0xff]
    %92 = vset.pattern.permute.xlu0 0
    %93 = vperm.xlu0 %92, %v59
    %v94 = vpop.permute.xlu0 %93
    %97 = vset.pattern.permute.xlu0 0
    %98 = vperm.xlu0 %97, %v60
    %v99 = vpop.permute.xlu0 %98
    %102 = vset.pattern.permute.xlu0 0
    %103 = vperm.xlu0 %102, %v61
    %v104 = vpop.permute.xlu0 %103
    %107 = vset.pattern.permute.xlu0 0
    %108 = vperm.xlu0 %107, %v62
    %v109 = vpop.permute.xlu0 %108
    %112 = vset.pattern.permute.xlu0 0
    %113 = vperm.xlu0 %112, %v63
    %v114 = vpop.permute.xlu0 %113
    %117 = vset.pattern.permute.xlu0 0
    %118 = vperm.xlu0 %117, %v64
    %v119 = vpop.permute.xlu0 %118
    %122 = vset.pattern.permute.xlu0 0
    %123 = vperm.xlu0 %122, %v65
    %v124 = vpop.permute.xlu0 %123
    %127 = vset.pattern.permute.xlu0 0
    %128 = vperm.xlu0 %127, %v66
    %v129 = vpop.permute.xlu0 %128
    %132 = vset.pattern.permute.xlu0 0
    %133 = vperm.xlu0 %132, %v67
    %v134 = vpop.permute.xlu0 %133
    %137 = vset.pattern.permute.xlu0 0
    %138 = vperm.xlu0 %137, %v68
    %v139 = vpop.permute.xlu0 %138
    %142 = vset.pattern.permute.xlu0 0
    %143 = vperm.xlu0 %142, %v69
    %v144 = vpop.permute.xlu0 %143
    %147 = vset.pattern.permute.xlu0 0
    %148 = vperm.xlu0 %147, %v70
    %v149 = vpop.permute.xlu0 %148
    %152 = vset.pattern.permute.xlu0 0
    %153 = vperm.xlu0 %152, %v71
    %v154 = vpop.permute.xlu0 %153
    %157 = vset.pattern.permute.xlu0 0
    %158 = vperm.xlu0 %157, %v72
    %v159 = vpop.permute.xlu0 %158
    %162 = vset.pattern.permute.xlu0 0
    %163 = vperm.xlu0 %162, %v73
    %v164 = vpop.permute.xlu0 %163
    %167 = vset.pattern.permute.xlu0 0
    %168 = vperm.xlu0 %167, %v74
    %v169 = vpop.permute.xlu0 %168
    %172 = vset.pattern.permute.xlu0 0
    %173 = vperm.xlu0 %172, %v75
    %v174 = vpop.permute.xlu0 %173
    %177 = vset.pattern.permute.xlu0 0
    %178 = vperm.xlu0 %177, %v76
    %v179 = vpop.permute.xlu0 %178
    %182 = vset.pattern.permute.xlu0 0
    %183 = vperm.xlu0 %182, %v77
    %v184 = vpop.permute.xlu0 %183
    %187 = vset.pattern.permute.xlu0 0
    %188 = vperm.xlu0 %187, %v78
    %v189 = vpop.permute.xlu0 %188
    %192 = vset.pattern.permute.xlu0 0
    %193 = vperm.xlu0 %192, %v79
    %v194 = vpop.permute.xlu0 %193
    %197 = vset.pattern.permute.xlu0 0
    %198 = vperm.xlu0 %197, %v80
    %v199 = vpop.permute.xlu0 %198
    %202 = vset.pattern.permute.xlu0 0
    %203 = vperm.xlu0 %202, %v81
    %v204 = vpop.permute.xlu0 %203
    %207 = vset.pattern.permute.xlu0 0
    %208 = vperm.xlu0 %207, %v82
    %v209 = vpop.permute.xlu0 %208
    %212 = vset.pattern.permute.xlu0 0
    %213 = vperm.xlu0 %212, %v83
    %v214 = vpop.permute.xlu0 %213
    %217 = vset.pattern.permute.xlu0 0
    %218 = vperm.xlu0 %217, %v84
    %v219 = vpop.permute.xlu0 %218
    %222 = vset.pattern.permute.xlu0 0
    %223 = vperm.xlu0 %222, %v85
    %v224 = vpop.permute.xlu0 %223
    %227 = vset.pattern.permute.xlu0 0
    %228 = vperm.xlu0 %227, %v86
    %v229 = vpop.permute.xlu0 %228
    %232 = vset.pattern.permute.xlu0 0
    %233 = vperm.xlu0 %232, %v87
    %v234 = vpop.permute.xlu0 %233
    %237 = vset.pattern.permute.xlu0 0
    %238 = vperm.xlu0 %237, %v88
    %v239 = vpop.permute.xlu0 %238
    %242 = vset.pattern.permute.xlu0 0
    %243 = vperm.xlu0 %242, %v89
    %v244 = vpop.permute.xlu0 %243
    %247 = vset.pattern.permute.xlu0 0
    %248 = vperm.xlu0 %247, %v90
    %v249 = vpop.permute.xlu0 %248
    %v283 = vunpack.c.l.b16 %v22
    %v284 = vunpack.c.l.b16 %v23
    %v285 = vunpack.c.l.b16 %v24
    %v286 = vunpack.c.l.b16 %v25
    %v287 = vunpack.c.l.b16 %v26
    %v288 = vunpack.c.l.b16 %v27
    %v289 = vunpack.c.l.b16 %v28
    %v290 = vunpack.c.l.b16 %v29
    %v291 = vunpack.c.l.b16 %v30
    %v292 = vunpack.c.l.b16 %v31
    %v293 = vunpack.c.l.b16 %v32
    %v294 = vunpack.c.l.b16 %v33
    %v295 = vunpack.c.l.b16 %v34
    %v296 = vunpack.c.l.b16 %v35
    %v297 = vunpack.c.l.b16 %v36
    %v298 = vunpack.c.l.b16 %v37
    %v299 = vunpack.c.l.b16 %v38
    %v300 = vunpack.c.l.b16 %v39
    %v301 = vunpack.c.l.b16 %v40
    %v302 = vunpack.c.l.b16 %v41
    %v303 = vunpack.c.l.b16 %v42
    %v304 = vunpack.c.l.b16 %v43
    %v305 = vunpack.c.l.b16 %v44
    %v306 = vunpack.c.l.b16 %v45
    %v307 = vunpack.c.l.b16 %v46
    %v308 = vunpack.c.l.b16 %v47
    %v309 = vunpack.c.l.b16 %v48
    %v310 = vunpack.c.l.b16 %v49
    %v311 = vunpack.c.l.b16 %v50
    %v312 = vunpack.c.l.b16 %v51
    %v313 = vunpack.c.l.b16 %v52
    %v314 = vunpack.c.l.b16 %v53
    %v315 = vpack.c.b16 %v284, %v283
    %v316 = vpack.c.b16 %v286, %v285
    %v317 = vpack.c.b16 %v288, %v287
    %v318 = vpack.c.b16 %v290, %v289
    %v319 = vpack.c.b16 %v292, %v291
    %v320 = vpack.c.b16 %v294, %v293
    %v321 = vpack.c.b16 %v296, %v295
    %v322 = vpack.c.b16 %v298, %v297
    %v323 = vpack.c.b16 %v300, %v299
    %v324 = vpack.c.b16 %v302, %v301
    %v325 = vpack.c.b16 %v304, %v303
    %v326 = vpack.c.b16 %v306, %v305
    %v327 = vpack.c.b16 %v308, %v307
    %v328 = vpack.c.b16 %v310, %v309
    %v329 = vpack.c.b16 %v312, %v311
    %v330 = vpack.c.b16 %v314, %v313
    %v336 = vunpack.c.l.b16 %v54
    %v337 = vunpack.c.l.b16 %v55
    %v338 = vunpack.c.l.b16 %v56
    %v339 = vunpack.c.l.b16 %v57
    %v340 = vunpack.c.l.b16 %v58
    %v341 = vpack.c.b16 %v337, %v336
    %v342 = vpack.c.b16 %v339, %v338
    %v343 = vpack.c.b16 %v340, %v340
    %vm346 = vcmask 293888
    %v348 = vsel %vm346, %v315, 0
    %v351 = vsel %vm346, %v316, 0
    %v354 = vsel %vm346, %v317, 0
    %v357 = vsel %vm346, %v318, 0
    %v360 = vsel %vm346, %v319, 0
    %v363 = vsel %vm346, %v320, 0
    %v366 = vsel %vm346, %v321, 0
    %v369 = vsel %vm346, %v322, 0
    %v372 = vsel %vm346, %v323, 0
    %v375 = vsel %vm346, %v324, 0
    %v378 = vsel %vm346, %v325, 0
    %v381 = vsel %vm346, %v326, 0
    %v384 = vsel %vm346, %v327, 0
    %v387 = vsel %vm346, %v328, 0
    %v390 = vsel %vm346, %v329, 0
    %v393 = vsel %vm346, %v330, 0
    %vm395 = vcmask 1041408
    %v397 = vsel %vm395, %v343, 0
    %399 = vmatprep.subr.bf16.mxu0 0
    %400 = vmatpush1.bf16.msra.mxu0 %v341
    %401 = vmatprep.subr.bf16.mxu0 0
    %402 = vmatpush1.bf16.msra.mxu0 %v342
    %403 = vmatprep.subr.bf16.mxu0 0
    %404 = vmatpush1.bf16.msra.mxu0 %v397
    %405 = vmatprep.subr.bf16.mxu0 0
    %406 = vmatpush1.bf16.msra.mxu0 0
    %407 = vmatprep.subr.bf16.mxu0 0
    %408 = vmatpush1.bf16.msra.mxu0 0
    %409 = vmatprep.subr.bf16.mxu0 0
    %410 = vmatpush1.bf16.msra.mxu0 0
    %411 = vmatprep.subr.bf16.mxu0 0
    %412 = vmatpush1.bf16.msra.mxu0 0
    %413 = vmatprep.subr.bf16.mxu0 0
    %414 = vmatpush1.bf16.msra.mxu0 0
    %415 = vmatprep.subr.bf16.mxu0 0
    %416 = vmatpush1.bf16.msra.mxu0 0
    %417 = vmatprep.subr.bf16.mxu0 0
    %418 = vmatpush1.bf16.msra.mxu0 0
    %419 = vmatprep.subr.bf16.mxu0 0
    %420 = vmatpush1.bf16.msra.mxu0 0
    %421 = vmatprep.subr.bf16.mxu0 0
    %422 = vmatpush1.bf16.msra.mxu0 0
    %423 = vmatprep.subr.bf16.mxu0 0
    %424 = vmatpush1.bf16.msra.mxu0 0
    %425 = vmatprep.subr.bf16.mxu0 0
    %426 = vmatpush1.bf16.msra.mxu0 0
    %427 = vmatprep.subr.bf16.mxu0 0
    %428 = vmatpush1.bf16.msra.mxu0 0
    %429 = vmatprep.subr.bf16.mxu0 0
    %430 = vmatpush1.bf16.msra.mxu0 0
    %431 = vmatprep.mubr.bf16.mxu0 0
    %432 = vmatmul.mubr.bf16.gmra.mrb[0].mxu0 %v348
    %v433 = vpop.f32.mrb[0].mxu0
    %v434 = vadd.f32 %v94, %v433
    %v435 = vpop.f32.mrb[0].mxu0
    %v436 = vpop.f32.mrb[0].mxu0
    %v437 = vadd.f32 %v99, %v436
    %v438 = vpop.f32.mrb[0].mxu0
    %439 = vmatprep.mubr.bf16.mxu0 0
    %440 = vmatmul.mubr.bf16.gmra.mrb[0].mxu0 %v351
    %v441 = vpop.f32.mrb[0].mxu0
    %v442 = vadd.f32 %v104, %v441
    %v443 = vpop.f32.mrb[0].mxu0
    %v444 = vpop.f32.mrb[0].mxu0
    %v445 = vadd.f32 %v109, %v444
    %v446 = vpop.f32.mrb[0].mxu0
    %447 = vmatprep.mubr.bf16.mxu0 0
    %448 = vmatmul.mubr.bf16.gmra.mrb[0].mxu0 %v354
    %v449 = vpop.f32.mrb[0].mxu0
    %v450 = vadd.f32 %v114, %v449
    %v451 = vpop.f32.mrb[0].mxu0
    %v452 = vpop.f32.mrb[0].mxu0
    %v453 = vadd.f32 %v119, %v452
    %v454 = vpop.f32.mrb[0].mxu0
    %455 = vmatprep.mubr.bf16.mxu0 0
    %456 = vmatmul.mubr.bf16.gmra.mrb[0].mxu0 %v357
    %v457 = vpop.f32.mrb[0].mxu0
    %v458 = vadd.f32 %v124, %v457
    %v459 = vpop.f32.mrb[0].mxu0
    %v460 = vpop.f32.mrb[0].mxu0
    %v461 = vadd.f32 %v129, %v460
    %v462 = vpop.f32.mrb[0].mxu0
    %463 = vmatprep.mubr.bf16.mxu0 0
    %464 = vmatmul.mubr.bf16.gmra.mrb[0].mxu0 %v360
    %v465 = vpop.f32.mrb[0].mxu0
    %v466 = vadd.f32 %v134, %v465
    %v467 = vpop.f32.mrb[0].mxu0
    %v468 = vpop.f32.mrb[0].mxu0
    %v469 = vadd.f32 %v139, %v468
    %v470 = vpop.f32.mrb[0].mxu0
    %471 = vmatprep.mubr.bf16.mxu0 0
    %472 = vmatmul.mubr.bf16.gmra.mrb[0].mxu0 %v363
    %v473 = vpop.f32.mrb[0].mxu0
    %v474 = vadd.f32 %v144, %v473
    %v475 = vpop.f32.mrb[0].mxu0
    %v476 = vpop.f32.mrb[0].mxu0
    %v477 = vadd.f32 %v149, %v476
    %v478 = vpop.f32.mrb[0].mxu0
    %479 = vmatprep.mubr.bf16.mxu0 0
    %480 = vmatmul.mubr.bf16.gmra.mrb[0].mxu0 %v366
    %v481 = vpop.f32.mrb[0].mxu0
    %v482 = vadd.f32 %v154, %v481
    %v483 = vpop.f32.mrb[0].mxu0
    %v484 = vpop.f32.mrb[0].mxu0
    %v485 = vadd.f32 %v159, %v484
    %v486 = vpop.f32.mrb[0].mxu0
    %487 = vmatprep.mubr.bf16.mxu0 0
    %488 = vmatmul.mubr.bf16.gmra.mrb[0].mxu0 %v369
    %v489 = vpop.f32.mrb[0].mxu0
    %v490 = vadd.f32 %v164, %v489
    %v491 = vpop.f32.mrb[0].mxu0
    %v492 = vpop.f32.mrb[0].mxu0
    %v493 = vadd.f32 %v169, %v492
    %v494 = vpop.f32.mrb[0].mxu0
    %495 = vmatprep.mubr.bf16.mxu0 0
    %496 = vmatmul.mubr.bf16.gmra.mrb[0].mxu0 %v372
    %v497 = vpop.f32.mrb[0].mxu0
    %v498 = vadd.f32 %v174, %v497
    %v499 = vpop.f32.mrb[0].mxu0
    %v500 = vpop.f32.mrb[0].mxu0
    %v501 = vadd.f32 %v179, %v500
    %v502 = vpop.f32.mrb[0].mxu0
    %503 = vmatprep.mubr.bf16.mxu0 0
    %504 = vmatmul.mubr.bf16.gmra.mrb[0].mxu0 %v375
    %v505 = vpop.f32.mrb[0].mxu0
    %v506 = vadd.f32 %v184, %v505
    %v507 = vpop.f32.mrb[0].mxu0
    %v508 = vpop.f32.mrb[0].mxu0
    %v509 = vadd.f32 %v189, %v508
    %v510 = vpop.f32.mrb[0].mxu0
    %511 = vmatprep.mubr.bf16.mxu0 0
    %512 = vmatmul.mubr.bf16.gmra.mrb[0].mxu0 %v378
    %v513 = vpop.f32.mrb[0].mxu0
    %v514 = vadd.f32 %v194, %v513
    %v515 = vpop.f32.mrb[0].mxu0
    %v516 = vpop.f32.mrb[0].mxu0
    %v517 = vadd.f32 %v199, %v516
    %v518 = vpop.f32.mrb[0].mxu0
    %519 = vmatprep.mubr.bf16.mxu0 0
    %520 = vmatmul.mubr.bf16.gmra.mrb[0].mxu0 %v381
    %v521 = vpop.f32.mrb[0].mxu0
    %v522 = vadd.f32 %v204, %v521
    %v523 = vpop.f32.mrb[0].mxu0
    %v524 = vpop.f32.mrb[0].mxu0
    %v525 = vadd.f32 %v209, %v524
    %v526 = vpop.f32.mrb[0].mxu0
    %527 = vmatprep.mubr.bf16.mxu0 0
    %528 = vmatmul.mubr.bf16.gmra.mrb[0].mxu0 %v384
    %v529 = vpop.f32.mrb[0].mxu0
    %v530 = vadd.f32 %v214, %v529
    %v531 = vpop.f32.mrb[0].mxu0
    %v532 = vpop.f32.mrb[0].mxu0
    %v533 = vadd.f32 %v219, %v532
    %v534 = vpop.f32.mrb[0].mxu0
    %535 = vmatprep.mubr.bf16.mxu0 0
    %536 = vmatmul.mubr.bf16.gmra.mrb[0].mxu0 %v387
    %v537 = vpop.f32.mrb[0].mxu0
    %v538 = vadd.f32 %v224, %v537
    %v539 = vpop.f32.mrb[0].mxu0
    %v540 = vpop.f32.mrb[0].mxu0
    %v541 = vadd.f32 %v229, %v540
    %v542 = vpop.f32.mrb[0].mxu0
    %543 = vmatprep.mubr.bf16.mxu0 0
    %544 = vmatmul.mubr.bf16.gmra.mrb[0].mxu0 %v390
    %v545 = vpop.f32.mrb[0].mxu0
    %v546 = vadd.f32 %v234, %v545
    %v547 = vpop.f32.mrb[0].mxu0
    %v548 = vpop.f32.mrb[0].mxu0
    %v549 = vadd.f32 %v239, %v548
    %v550 = vpop.f32.mrb[0].mxu0
    %551 = vmatprep.mubr.bf16.mxu0 0
    %552 = vmatmul.mubr.bf16.gmra.mrb[0].mxu0 %v393
    %v553 = vpop.f32.mrb[0].mxu0
    %v554 = vadd.f32 %v244, %v553
    %v555 = vpop.f32.mrb[0].mxu0
    %v556 = vpop.f32.mrb[0].mxu0
    %v557 = vadd.f32 %v249, %v556
    %v558 = vpop.f32.mrb[0].mxu0
    %559 = vdwg.mxu0
    %v560 = vmax.f32 %v434, 0.0
    %v561 = vmax.f32 %v437, 0.0
    %v562 = vmax.f32 %v442, 0.0
    %v563 = vmax.f32 %v445, 0.0
    %v564 = vmax.f32 %v450, 0.0
    %v565 = vmax.f32 %v453, 0.0
    %v566 = vmax.f32 %v458, 0.0
    %v567 = vmax.f32 %v461, 0.0
    %v568 = vmax.f32 %v466, 0.0
    %v569 = vmax.f32 %v469, 0.0
    %v570 = vmax.f32 %v474, 0.0
    %v571 = vmax.f32 %v477, 0.0
    %v572 = vmax.f32 %v482, 0.0
    %v573 = vmax.f32 %v485, 0.0
    %v574 = vmax.f32 %v490, 0.0
    %v575 = vmax.f32 %v493, 0.0
    %v576 = vmax.f32 %v498, 0.0
    %v577 = vmax.f32 %v501, 0.0
    %v578 = vmax.f32 %v506, 0.0
    %v579 = vmax.f32 %v509, 0.0
    %v580 = vmax.f32 %v514, 0.0
    %v581 = vmax.f32 %v517, 0.0
    %v582 = vmax.f32 %v522, 0.0
    %v583 = vmax.f32 %v525, 0.0
    %v584 = vmax.f32 %v530, 0.0
    %v585 = vmax.f32 %v533, 0.0
    %v586 = vmax.f32 %v538, 0.0
    %v587 = vmax.f32 %v541, 0.0
    %v588 = vmax.f32 %v546, 0.0
    %v589 = vmax.f32 %v549, 0.0
    %v590 = vmax.f32 %v554, 0.0
    %v591 = vmax.f32 %v557, 0.0
    %v592 = vpack.c.bf16 %v561, %v560
    %v593 = vpack.c.bf16 %v563, %v562
    %v594 = vpack.c.bf16 %v565, %v564
    %v595 = vpack.c.bf16 %v567, %v566
    %v596 = vpack.c.bf16 %v569, %v568
    %v597 = vpack.c.bf16 %v571, %v570
    %v598 = vpack.c.bf16 %v573, %v572
    %v599 = vpack.c.bf16 %v575, %v574
    %v600 = vpack.c.bf16 %v577, %v576
    %v601 = vpack.c.bf16 %v579, %v578
    %v602 = vpack.c.bf16 %v581, %v580
    %v603 = vpack.c.bf16 %v583, %v582
    %v604 = vpack.c.bf16 %v585, %v584
    %v605 = vpack.c.bf16 %v587, %v586
    %v606 = vpack.c.bf16 %v589, %v588
    %v607 = vpack.c.bf16 %v591, %v590
    %v608 = vld [vmem:[%s3] sm:$0xff]
    %v609 = vld [vmem:[%s3 + $0x8] sm:$0xff]
    %v610 = vld [vmem:[%s4] sm:$0xff]
    %v611 = vld [vmem:[%s4 + $0x8] sm:$0xff]
    %613 = vset.pattern.permute.xlu0 0
    %614 = vperm.xlu0 %613, %v610
    %v615 = vpop.permute.xlu0 %614
    %618 = vset.pattern.permute.xlu0 0
    %619 = vperm.xlu0 %618, %v611
    %v620 = vpop.permute.xlu0 %619
    %v624 = vunpack.c.l.b16 %v608
    %v625 = vunpack.c.h.b16 %v608
    %v626 = vunpack.c.l.b16 %v609
    %v627 = vunpack.c.h.b16 %v609
    %v628 = vpack.c.b16 %v626, %v624
    %v629 = vpack.c.b16 %v627, %v625
    %632 = vmatprep.subr.bf16.mxu0 0
    %633 = vmatpush1.bf16.msra.mxu0 %v592
    %634 = vmatprep.subr.bf16.mxu0 0
    %635 = vmatpush1.bf16.msra.mxu0 %v593
    %636 = vmatprep.subr.bf16.mxu0 0
    %637 = vmatpush1.bf16.msra.mxu0 %v594
    %638 = vmatprep.subr.bf16.mxu0 0
    %639 = vmatpush1.bf16.msra.mxu0 %v595
    %640 = vmatprep.subr.bf16.mxu0 0
    %641 = vmatpush1.bf16.msra.mxu0 %v596
    %642 = vmatprep.subr.bf16.mxu0 0
    %643 = vmatpush1.bf16.msra.mxu0 %v597
    %644 = vmatprep.subr.bf16.mxu0 0
    %645 = vmatpush1.bf16.msra.mxu0 %v598
    %646 = vmatprep.subr.bf16.mxu0 0
    %647 = vmatpush1.bf16.msra.mxu0 %v599
    %648 = vmatprep.subr.bf16.mxu0 0
    %649 = vmatpush1.bf16.msra.mxu0 %v600
    %650 = vmatprep.subr.bf16.mxu0 0
    %651 = vmatpush1.bf16.msra.mxu0 %v601
    %652 = vmatprep.subr.bf16.mxu0 0
    %653 = vmatpush1.bf16.msra.mxu0 %v602
    %654 = vmatprep.subr.bf16.mxu0 0
    %655 = vmatpush1.bf16.msra.mxu0 %v603
    %656 = vmatprep.subr.bf16.mxu0 0
    %657 = vmatpush1.bf16.msra.mxu0 %v604
    %658 = vmatprep.subr.bf16.mxu0 0
    %659 = vmatpush1.bf16.msra.mxu0 %v605
    %660 = vmatprep.subr.bf16.mxu0 0
    %661 = vmatpush1.bf16.msra.mxu0 %v606
    %662 = vmatprep.subr.bf16.mxu0 0
    %663 = vmatpush1.bf16.msra.mxu0 %v607
    %664 = vmatprep.mubr.bf16.mxu0 %v629
    %665 = vmatmul.mubr.bf16.gmra.mrb[0].mxu0 %v628
    %v666 = vpop.f32.mrb[0].mxu0
    %v667 = vadd.f32 %v615, %v666
    %v668 = vpop.f32.mrb[0].mxu0
    %v669 = vpop.f32.mrb[0].mxu0
    %v670 = vadd.f32 %v620, %v669
    %v671 = vpop.f32.mrb[0].mxu0
    %672 = vdwg.mxu0
    %673 = vst [vmem:[#allocation2] sm:$0xff] %v667
    %674 = vst [vmem:[#allocation2 + $0x8] sm:$0xff] %v670
    // Predicated region
    $region22: #{tpu_custom_call.1} parent=1 // pred_check
      _
    $region23: #{tpu_custom_call.1} parent=1 // pred_check_branch
      %676 = sbr.rel (0) target = $region25
    $region24: #{tpu_custom_call.1} parent=1 // pred_region
      %s678 = ssub.s32 256, 256
      %679 = vsyncadd [#allocation3], %s678
      %s680 = sshll.u32 [#allocation2], 4
      %s681 = int_to_ptr.vmem [resolvable:$true] %s680
      %686 = dma.vmem_to_hbm [thread:$0]  %s681, 256, %s5, [#allocation3], 128, 128, 8
    $region25: #{tpu_custom_call.1} parent=1 // pred_fallthru
      _
    // Predicated region
    $region26: #{tpu_custom_call.1} parent=1 // pred_check
      _
    $region27: #{tpu_custom_call.1} parent=1 // pred_check_branch
      %688 = sbr.rel (0) target = $region29
    $region28: #{tpu_custom_call.1} parent=1 // pred_region
      %689 = dma.done [#allocation3], 256
    $region29: #{tpu_custom_call.1} parent=1 // pred_fallthru
      _
    %690 = vsyncpa [#allocation3], 1

</llo_original>
